<compile_context>
chip_gen: v7x
topology: tpu7x:2x2x1
jax: 0.10.0
libtpu: 0.0.40
codegen_flags: <defaults>
</compile_context>

<pallas_src>
import jax
import jax.numpy as jnp
from jax import lax
from jax.experimental import pallas as pl
from jax.experimental.pallas import tpu as pltpu

_HIGHEST = jax.lax.Precision.HIGHEST


def _round_up(x, m):
    return (x + m - 1) // m * m


def _pick_chunk(T, max_ts):
    ts = max(1, min(T, max_ts))
    while T % ts:
        ts -= 1
    return ts


def _rnn_recur_kernel(xw_ref, h0_ref, whh_ref, hseq_ref, hfin_ref):
    """One grid step == TS timesteps of  h = tanh(xw_t + h @ W_h).

    W_h and the carried hidden (hfin_ref) have constant index maps, so they
    stay resident in VMEM across the whole grid; only the xw chunk and the
    h-sequence chunk stream per grid step.
    """
    c = pl.program_id(0)

    # Seed the carried hidden from the provided initial hidden state.
    @pl.when(c == 0)
    def _():
        hfin_ref[...] = h0_ref[...]

    whh = whh_ref[...]              # (Hp, Hp), read once per chunk
    ts = xw_ref.shape[0]            # static chunk length

    def step(i, h):
        # xw already contains x_t @ W_x + b_ih (hoisted outside the kernel).
        h_new = jnp.tanh(
            xw_ref[i] + jnp.dot(h, whh, preferred_element_type=jnp.float32)
        ).astype(h.dtype)
        hseq_ref[i] = h_new
        return h_new

    # Unrolled short serial chain -> LLO can overlap loads/stores with MXU/EUP.
    hfin_ref[...] = lax.fori_loop(0, ts, step, hfin_ref[...], unroll=True)


def rnn_layer_seq_forward(x_seq, hidden0, params, max_chunk=16):
    """Run one RNNLayer over a (T, B, I) sequence.

    Returns (outputs (T, B, O), final_hidden (B, H)).
    """
    w_ih, b_ih, w_o, b_o = (params["w_ih"], params["b_ih"],
                            params["w_o"], params["b_o"])
    T, B, I = x_seq.shape
    H, O = w_o.shape
    dtype = x_seq.dtype

    # Lane/sublane-dense padding: features -> x128 (lanes), batch -> x8 (f32).
    Bp = _round_up(B, 8)
    Hp = _round_up(H, 128)
    TS = _pick_chunk(T, max_chunk)

    # ---- Hoisted non-recurrent input projection (one big MXU-friendly dot).
    # Padded weight columns / bias lanes are zero, so the Hp padding of xw is
    # exactly zero and the padded hidden lanes/rows stay zero in the kernel.
    w_x_p = jnp.zeros((I, Hp), dtype).at[:, :H].set(w_ih[:I, :])
    b_ih_p = jnp.zeros((Hp,), dtype).at[:H].set(b_ih.reshape(-1))
    xw = jnp.dot(x_seq.reshape(T * B, I), w_x_p, precision=_HIGHEST) + b_ih_p
    xw_p = jnp.zeros((T, Bp, Hp), dtype).at[:, :B, :].set(xw.reshape(T, B, Hp))

    # Recurrent weight (VMEM-resident) and initial hidden, zero-padded.
    w_h_p = jnp.zeros((Hp, Hp), dtype).at[:H, :H].set(w_ih[I:, :])
    h0_p = jnp.zeros((Bp, Hp), dtype).at[:B, :H].set(hidden0)

    const = lambda shape: pl.BlockSpec(shape, lambda c: (0,) * len(shape))

    # Explicit VMEM budget: streamed xw/h chunks are double-buffered, W_h and
    # the hidden blocks are resident.  Sized from the blocks, clamped to stay
    # inside v7x's 64 MiB physical VMEM.
    itemsize = jnp.dtype(dtype).itemsize
    need = itemsize * (4 * TS * Bp * Hp + 2 * Hp * Hp + 4 * Bp * Hp)
    vmem_limit = int(min(max(2 * need, 2 * 1024 * 1024), 64 * 1024 * 1024))

    h_seq_p, h_fin_p = pl.pallas_call(
        _rnn_recur_kernel,
        out_shape=(jax.ShapeDtypeStruct((T, Bp, Hp), dtype),
                   jax.ShapeDtypeStruct((Bp, Hp), dtype)),
        grid=(T // TS,),
        in_specs=[
            pl.BlockSpec((TS, Bp, Hp), lambda c: (c, 0, 0)),   # xw chunk (streamed)
            const((Bp, Hp)),                                   # hidden0   (resident)
            const((Hp, Hp)),                                   # W_h       (resident)
        ],
        out_specs=(pl.BlockSpec((TS, Bp, Hp), lambda c: (c, 0, 0)),  # h sequence
                   const((Bp, Hp))),                                 # carried/final h
        compiler_params=pltpu.CompilerParams(
            dimension_semantics=("arbitrary",),      # recurrence over time chunks
            vmem_limit_bytes=vmem_limit),
    )(xw_p, h0_p, w_h_p)

    # ---- Hoisted output projection: one (T*B, H) @ (H, O) matmul.
    h_seq = h_seq_p[:, :B, :H].reshape(T * B, H)
    out = jnp.dot(h_seq, w_o, precision=_HIGHEST) + b_o
    return out.reshape(T, B, O), h_fin_p[:B, :H]


def rnn_forward(x_seq, hidden_states, layer_params, max_chunk=16):
    """RNN.forward: layer i at time t consumes layer i-1's output at time t,
    so cascading layers == running each layer over the full sequence in turn.
    (As in the PyTorch module, num_layer > 1 requires output_size == hidden_size.)
    """
    outs = x_seq
    new_hidden = []
    for p, h0 in zip(layer_params, hidden_states):
        outs, h_fin = rnn_layer_seq_forward(outs, h0, p, max_chunk=max_chunk)
        new_hidden.append(h_fin)
    return outs, new_hidden


def init_layer_params(key, input_size, hidden_size, output_size,
                      dtype=jnp.float32):
    """Deterministic init mimicking nn.Linear's default (uniform +/- 1/sqrt(fan_in)).
    i2h weight is stored transposed as one (I+H, H) block (rows 0:I = x part,
    rows I: = h part)."""
    k1, k2, k3, k4 = jax.random.split(key, 4)
    fan_i2h = input_size + hidden_size
    b1 = 1.0 / jnp.sqrt(fan_i2h)
    b2 = 1.0 / jnp.sqrt(hidden_size)
    return {
        "w_ih": jax.random.uniform(k1, (fan_i2h, hidden_size), dtype, -b1, b1),
        "b_ih": jax.random.uniform(k2, (1, hidden_size), dtype, -b1, b1),
        "w_o": jax.random.uniform(k3, (hidden_size, output_size), dtype, -b2, b2),
        "b_o": jax.random.uniform(k4, (1, output_size), dtype, -b2, b2),
    }


def _reference_rnn(x_seq, hidden_states, layer_params):
    """Pure-JAX reference mirroring RNN.forward exactly."""
    T = x_seq.shape[0]
    hs = list(hidden_states)
    outputs = []
    for t in range(T):
        inp = x_seq[t]
        out = None
        for i, p in enumerate(layer_params):
            combined = jnp.concatenate([inp, hs[i]], axis=1)
            h = jnp.tanh(jnp.dot(combined, p["w_ih"], precision=_HIGHEST)
                         + p["b_ih"])
            out = jnp.dot(h, p["w_o"], precision=_HIGHEST) + p["b_o"]
            hs[i] = h
            inp = out
        outputs.append(out)
    return jnp.stack(outputs), hs


if __name__ == "__main__":
    T, B, I, H, O = 8, 2, 16, 32, 8
    num_layers = 1  # PyTorch default; >1 is only well-formed when O == H.

    key = jax.random.PRNGKey(0)
    k_x, k_h, k_p = jax.random.split(key, 3)

    x_seq = jax.random.normal(k_x, (T, B, I), jnp.float32)
    # init_hidden uses kaiming_uniform_ on (B, H); any deterministic init works.
    bound_h = jnp.sqrt(6.0 / H)
    hidden0 = [jax.random.uniform(k, (B, H), jnp.float32, -bound_h, bound_h)
               for k in jax.random.split(k_h, num_layers)]
    layer_params = [
        init_layer_params(k, I if i == 0 else H, H, O)
        for i, k in enumerate(jax.random.split(k_p, num_layers))
    ]

    # max_chunk=4 -> grid=(2,) here, exercising the cross-chunk hidden carry.
    outputs, h_final = rnn_forward(x_seq, hidden0, layer_params, max_chunk=4)
    outputs = jax.block_until_ready(outputs)
    h_final = [jax.block_until_ready(h) for h in h_final]

    ref_out, ref_h = _reference_rnn(x_seq, hidden0, layer_params)
    assert outputs.shape == (T, B, O)
    assert all(h.shape == (B, H) for h in h_final)
    # Tolerance covers MXU bf16-pass rounding differences between the XLA
    # reference matmuls and the Mosaic recurrent matmul.
    assert jnp.allclose(outputs, ref_out, atol=2e-3, rtol=2e-3), (
        "max |diff| = %g" % float(jnp.max(jnp.abs(outputs - ref_out))))
    for h, rh in zip(h_final, ref_h):
        assert jnp.allclose(h, rh, atol=2e-3, rtol=2e-3), (
            "max |diff| = %g" % float(jnp.max(jnp.abs(h - rh))))

    print("KERNEL_OK")
</pallas_src>

<mosaic_0001>
module attributes {stable_mosaic.version = 11 : i64} {
  func.func @_rnn_recur_kernel(%arg0: i32, %arg1: memref<4x8x128xf32, #tpu.memory_space<vmem>>, %arg2: memref<8x128xf32, #tpu.memory_space<vmem>>, %arg3: memref<128x128xf32, #tpu.memory_space<vmem>>, %arg4: memref<4x8x128xf32, #tpu.memory_space<vmem>>, %arg5: memref<8x128xf32, #tpu.memory_space<vmem>>) attributes {dimension_semantics = [#tpu.dimension_semantics<arbitrary>], iteration_bounds = array<i64: 2>, scalar_prefetch = 0 : i64, scratch_operands = 0 : i64, tpu.core_type = #tpu.core_type<tc>, window_params = [{transform_indices = @transform_0, window_bounds = array<i64: 4, 8, 128>}, {pipeline_mode = #tpu.pipeline_mode<synchronous>, transform_indices = @transform_1, window_bounds = array<i64: 8, 128>}, {pipeline_mode = #tpu.pipeline_mode<synchronous>, transform_indices = @transform_2, window_bounds = array<i64: 128, 128>}, {transform_indices = @transform_3, window_bounds = array<i64: 4, 8, 128>}, {pipeline_mode = #tpu.pipeline_mode<synchronous>, transform_indices = @transform_4, window_bounds = array<i64: 8, 128>}]} {
    %c0_i32 = arith.constant 0 : i32
    %0 = arith.cmpi eq, %arg0, %c0_i32 : i32
    %1 = arith.extui %0 : i1 to i32
    %c0_i32_0 = arith.constant 0 : i32
    %2 = arith.cmpi ne, %1, %c0_i32_0 : i32
    scf.if %2 {
      %c0_26 = arith.constant 0 : index
      %c0_27 = arith.constant 0 : index
      %46 = vector.load %arg2[%c0_26, %c0_27] : memref<8x128xf32, #tpu.memory_space<vmem>>, vector<8x128xf32>
      %c0_28 = arith.constant 0 : index
      %c0_29 = arith.constant 0 : index
      %47 = vector.load %arg5[%c0_28, %c0_29] : memref<8x128xf32, #tpu.memory_space<vmem>>, vector<8x128xf32>
      tpu.vector_store %arg5[%c0_28, %c0_29], %46 {strides = array<i32>} : memref<8x128xf32, #tpu.memory_space<vmem>>, vector<8x128xf32>,
    } else {
    }
    %c0 = arith.constant 0 : index
    %c0_1 = arith.constant 0 : index
    %3 = vector.load %arg3[%c0, %c0_1] : memref<128x128xf32, #tpu.memory_space<vmem>>, vector<128x128xf32>
    %c0_2 = arith.constant 0 : index
    %c0_3 = arith.constant 0 : index
    %4 = vector.load %arg5[%c0_2, %c0_3] : memref<8x128xf32, #tpu.memory_space<vmem>>, vector<8x128xf32>
    %c0_i32_4 = arith.constant 0 : i32
    %5 = arith.index_cast %c0_i32_4 : i32 to index
    %c0_5 = arith.constant 0 : index
    %c0_6 = arith.constant 0 : index
    %6 = vector.load %arg1[%5, %c0_5, %c0_6] : memref<4x8x128xf32, #tpu.memory_space<vmem>>, vector<1x8x128xf32>
    %7 = vector.shape_cast %6 : vector<1x8x128xf32> to vector<8x128xf32>
    %cst = arith.constant dense<0.000000e+00> : vector<8x128xf32>
    %8 = tpu.matmul %4, %3, %cst {dimension_numbers = #tpu.dot_dimension_numbers<[1], [0], [0], [1], [0, 0, 1, 1], [], []>} : vector<8x128xf32>, vector<128x128xf32>, vector<8x128xf32> -> vector<8x128xf32>
    %9 = arith.addf %7, %8 : vector<8x128xf32>
    %10 = math.tanh %9 : vector<8x128xf32>
    %11 = arith.index_cast %c0_i32_4 : i32 to index
    %c0_7 = arith.constant 0 : index
    %c0_8 = arith.constant 0 : index
    %12 = vector.load %arg4[%11, %c0_7, %c0_8] : memref<4x8x128xf32, #tpu.memory_space<vmem>>, vector<1x8x128xf32>
    %13 = vector.shape_cast %12 : vector<1x8x128xf32> to vector<8x128xf32>
    %14 = vector.shape_cast %10 : vector<8x128xf32> to vector<1x8x128xf32>
    tpu.vector_store %arg4[%11, %c0_7, %c0_8], %14 {strides = array<i32>} : memref<4x8x128xf32, #tpu.memory_space<vmem>>, vector<1x8x128xf32>,
    %c1_i32 = arith.constant 1 : i32
    %15 = arith.index_cast %c1_i32 : i32 to index
    %c0_9 = arith.constant 0 : index
    %c0_10 = arith.constant 0 : index
    %16 = vector.load %arg1[%15, %c0_9, %c0_10] : memref<4x8x128xf32, #tpu.memory_space<vmem>>, vector<1x8x128xf32>
    %17 = vector.shape_cast %16 : vector<1x8x128xf32> to vector<8x128xf32>
    %cst_11 = arith.constant dense<0.000000e+00> : vector<8x128xf32>
    %18 = tpu.matmul %10, %3, %cst_11 {dimension_numbers = #tpu.dot_dimension_numbers<[1], [0], [0], [1], [0, 0, 1, 1], [], []>} : vector<8x128xf32>, vector<128x128xf32>, vector<8x128xf32> -> vector<8x128xf32>
    %19 = arith.addf %17, %18 : vector<8x128xf32>
    %20 = math.tanh %19 : vector<8x128xf32>
    %21 = arith.index_cast %c1_i32 : i32 to index
    %c0_12 = arith.constant 0 : index
    %c0_13 = arith.constant 0 : index
    %22 = vector.load %arg4[%21, %c0_12, %c0_13] : memref<4x8x128xf32, #tpu.memory_space<vmem>>, vector<1x8x128xf32>
    %23 = vector.shape_cast %22 : vector<1x8x128xf32> to vector<8x128xf32>
    %24 = vector.shape_cast %20 : vector<8x128xf32> to vector<1x8x128xf32>
    tpu.vector_store %arg4[%21, %c0_12, %c0_13], %24 {strides = array<i32>} : memref<4x8x128xf32, #tpu.memory_space<vmem>>, vector<1x8x128xf32>,
    %c2_i32 = arith.constant 2 : i32
    %25 = arith.index_cast %c2_i32 : i32 to index
    %c0_14 = arith.constant 0 : index
    %c0_15 = arith.constant 0 : index
    %26 = vector.load %arg1[%25, %c0_14, %c0_15] : memref<4x8x128xf32, #tpu.memory_space<vmem>>, vector<1x8x128xf32>
    %27 = vector.shape_cast %26 : vector<1x8x128xf32> to vector<8x128xf32>
    %cst_16 = arith.constant dense<0.000000e+00> : vector<8x128xf32>
    %28 = tpu.matmul %20, %3, %cst_16 {dimension_numbers = #tpu.dot_dimension_numbers<[1], [0], [0], [1], [0, 0, 1, 1], [], []>} : vector<8x128xf32>, vector<128x128xf32>, vector<8x128xf32> -> vector<8x128xf32>
    %29 = arith.addf %27, %28 : vector<8x128xf32>
    %30 = math.tanh %29 : vector<8x128xf32>
    %31 = arith.index_cast %c2_i32 : i32 to index
    %c0_17 = arith.constant 0 : index
    %c0_18 = arith.constant 0 : index
    %32 = vector.load %arg4[%31, %c0_17, %c0_18] : memref<4x8x128xf32, #tpu.memory_space<vmem>>, vector<1x8x128xf32>
    %33 = vector.shape_cast %32 : vector<1x8x128xf32> to vector<8x128xf32>
    %34 = vector.shape_cast %30 : vector<8x128xf32> to vector<1x8x128xf32>
    tpu.vector_store %arg4[%31, %c0_17, %c0_18], %34 {strides = array<i32>} : memref<4x8x128xf32, #tpu.memory_space<vmem>>, vector<1x8x128xf32>,
    %c3_i32 = arith.constant 3 : i32
    %35 = arith.index_cast %c3_i32 : i32 to index
    %c0_19 = arith.constant 0 : index
    %c0_20 = arith.constant 0 : index
    %36 = vector.load %arg1[%35, %c0_19, %c0_20] : memref<4x8x128xf32, #tpu.memory_space<vmem>>, vector<1x8x128xf32>
    %37 = vector.shape_cast %36 : vector<1x8x128xf32> to vector<8x128xf32>
    %cst_21 = arith.constant dense<0.000000e+00> : vector<8x128xf32>
    %38 = tpu.matmul %30, %3, %cst_21 {dimension_numbers = #tpu.dot_dimension_numbers<[1], [0], [0], [1], [0, 0, 1, 1], [], []>} : vector<8x128xf32>, vector<128x128xf32>, vector<8x128xf32> -> vector<8x128xf32>
    %39 = arith.addf %37, %38 : vector<8x128xf32>
    %40 = math.tanh %39 : vector<8x128xf32>
    %41 = arith.index_cast %c3_i32 : i32 to index
    %c0_22 = arith.constant 0 : index
    %c0_23 = arith.constant 0 : index
    %42 = vector.load %arg4[%41, %c0_22, %c0_23] : memref<4x8x128xf32, #tpu.memory_space<vmem>>, vector<1x8x128xf32>
    %43 = vector.shape_cast %42 : vector<1x8x128xf32> to vector<8x128xf32>
    %44 = vector.shape_cast %40 : vector<8x128xf32> to vector<1x8x128xf32>
    tpu.vector_store %arg4[%41, %c0_22, %c0_23], %44 {strides = array<i32>} : memref<4x8x128xf32, #tpu.memory_space<vmem>>, vector<1x8x128xf32>,
    %c4_i32 = arith.constant 4 : i32
    %c0_24 = arith.constant 0 : index
    %c0_25 = arith.constant 0 : index
    %45 = vector.load %arg5[%c0_24, %c0_25] : memref<8x128xf32, #tpu.memory_space<vmem>>, vector<8x128xf32>
    tpu.vector_store %arg5[%c0_24, %c0_25], %40 {strides = array<i32>} : memref<8x128xf32, #tpu.memory_space<vmem>>, vector<8x128xf32>,
    return
  }
  func.func @transform_0(%arg0: i32) -> (i32, i32, i32) {
    %c0_i32 = arith.constant 0 : i32
    %c0_i32_0 = arith.constant 0 : i32
    %c0_i32_1 = arith.constant 0 : i32
    return %arg0, %c0_i32, %c0_i32_0 : i32, i32, i32
  }
  func.func @transform_1(%arg0: i32) -> (i32, i32) {
    %c0_i32 = arith.constant 0 : i32
    %c0_i32_0 = arith.constant 0 : i32
    %c0_i32_1 = arith.constant 0 : i32
    return %c0_i32, %c0_i32_0 : i32, i32
  }
  func.func @transform_2(%arg0: i32) -> (i32, i32) {
    %c0_i32 = arith.constant 0 : i32
    %c0_i32_0 = arith.constant 0 : i32
    %c0_i32_1 = arith.constant 0 : i32
    return %c0_i32, %c0_i32_0 : i32, i32
  }
  func.func @transform_3(%arg0: i32) -> (i32, i32, i32) {
    %c0_i32 = arith.constant 0 : i32
    %c0_i32_0 = arith.constant 0 : i32
    %c0_i32_1 = arith.constant 0 : i32
    return %arg0, %c0_i32, %c0_i32_0 : i32, i32, i32
  }
  func.func @transform_4(%arg0: i32) -> (i32, i32) {
    %c0_i32 = arith.constant 0 : i32
    %c0_i32_0 = arith.constant 0 : i32
    %c0_i32_1 = arith.constant 0 : i32
    return %c0_i32, %c0_i32_0 : i32, i32
  }
}

</mosaic_0001>

<llo_original>
// kernel: tpu_custom_call.1
$region0: #{tpu_custom_call.1}
  #allocation0 [shape = 'u32[]', space=smem, size = 0x4, offset = 0x4, fixed_abs, tag = 'smem constant byte address 0x4 - core index']
  #allocation1 [shape = 'u32[144,128]{1,0:T(1,128)}', space=vmem, size = 0x12000, scoped, tag = 'internal scratch']
  %s0 = inlined_call_operand.hbm [shape: f32[8,8,128], index: 0, kind: input, shape index: {}]
  %s1 = inlined_call_operand.hbm [shape: f32[8,128], index: 1, kind: input, shape index: {}]
  %s2 = inlined_call_operand.hbm [shape: f32[128,128], index: 2, kind: input, shape index: {}]
  %s3 = inlined_call_operand.hbm [shape: f32[8,8,128], index: 3, kind: output, shape index: {0}]
  %s4 = inlined_call_operand.hbm [shape: f32[8,128], index: 4, kind: output, shape index: {1}]
  %5 = xla_tuple %s3, %s4
  %s6 = sld [smem:[#allocation0]]
  $region69: #{tpu_custom_call.1} parent=0
    _
  %s8 = ssub.s32 1, %s6
  %s9 = scalar_select 0, %s8, %s6
  $region1: #{tpu_custom_call.1} parent=0
    #allocation2 [shape = 'u8[32768]{0}', space=vmem, size = 0x8000, scoped, tag = 'input window, operand 0']
    #allocation3 [shape = 's32[2]{0}', space=sflag, size = 0x8, scoped, tag = 'scoped memory for tpu_custom_call.1']
    #allocation4 [shape = 's32[2]{0}', space=sflag, size = 0x8, scoped, tag = 'scoped memory for tpu_custom_call.1']
    #allocation5 [shape = 'u8[4096]{0}', space=vmem, size = 0x1000, scoped, tag = 'input window, operand 1, single buffered']
    #allocation6 [shape = 's32[1]{0}', space=sflag, size = 0x4, scoped, tag = 'scoped memory for tpu_custom_call.1']
    #allocation7 [shape = 'u8[65536]{0}', space=vmem, size = 0x10000, scoped, tag = 'input window, operand 2, single buffered']
    #allocation8 [shape = 'u8[32768]{0}', space=vmem, size = 0x8000, scoped, tag = 'output window, operand 0']
    #allocation9 [shape = 'u8[4096]{0}', space=vmem, size = 0x1000, scoped, tag = 'output window, operand 1, single buffered']
    #allocation10 [shape = 's32[1]{0}', space=sflag, size = 0x4, scoped, tag = 'scoped memory for tpu_custom_call.1']
    %10 = vsyncpa [#allocation3], 0
    %s11 = scalar_lea.sflag [#allocation3], 1
    %12 = vsyncpa %s11, 0
    %13 = vsyncpa [#allocation6], 0
    %14 = vsyncpa [#allocation4], 0
    %s15 = scalar_lea.sflag [#allocation4], 1
    %16 = vsyncpa %s15, 0
    %17 = vsyncpa [#allocation10], 0
    loop: start=0, step=1, limit=4
    $region2: #{tpu_custom_call.1} parent=1 // loop_pre_header
      _
    $region3: #{tpu_custom_call.1} parent=1 // loop_header
      %s19 = sphi 0, %s23
      %p20 = scmp.ge.s32.totalorder %s19, 4
      %s29 = sphi 0, %s31
      %s32 = sphi 0, %s29
      %s33 = sphi 0, %s32
      %s49 = sphi 0, %s33
      %s53 = sphi 0, %s53
      %s55 = sphi 0, %s53
      %s56 = sphi 0, %s55
      %s70 = sphi 0, %s56
      %s74 = sphi 0, %s74
      %s76 = sphi 0, %s74
      %s77 = sphi 0, %s76
      %s91 = sphi 0, %s77
      %s97 = sphi 0, %s99
      %s100 = sphi 0, %s97
      %s101 = sphi 0, %s100
      %s117 = sphi 0, %s101
      %s121 = sphi 0, %s121
      %s123 = sphi 0, %s121
      %s124 = sphi 0, %s123
      %s138 = sphi 0, %s124
    $region4: #{tpu_custom_call.1} parent=1 // loop_header_branch
      %22 = sbr.rel (%p20) target = $region8
    $region5: #{tpu_custom_call.1} parent=1 // loop_body
      %s24 = ssub.s32 %s19, 1
      %s25 = ssub.s32 %s19, 2
      %s26 = sadd.s32 %s19, 1
      %s27 = ssub.s32 %s19, %s26
      %p28 = scmp.eq.s32.totalorder %s27, 0
      %s30 = sadd.s32 %s29, 1
      %s31 = scalar_select %p28, %s29, %s30
      %p34 = pneg %p28
      %p35 = scmp.eq.s32.totalorder %s19, 1
      %p36 = por %p34, %p35
      %p37 = scmp.ne.s32.totalorder %s29, %s32
      %p38 = scmp.eq.s32.totalorder %s19, 0
      %p39 = por %p37, %p38
      %p40 = scmp.ne.s32.totalorder %s29, %s32
      %p41 = scmp.eq.s32.totalorder %s24, 1
      %p42 = por %p40, %p41
      %p43 = scmp.ne.s32.totalorder %s32, %s33
      %p44 = scmp.eq.s32.totalorder %s24, 0
      %p45 = por %p43, %p44
      %p46 = scmp.ne.s32.totalorder %s32, %s33
      %p47 = scmp.eq.s32.totalorder %s25, 1
      %p48 = por %p46, %p47
      %p50 = scmp.ne.s32.totalorder %s33, %s49
      %p51 = scmp.eq.s32.totalorder %s25, 0
      %p52 = por %p50, %p51
      %s54 = sadd.s32 %s53, 1
      %p57 = scmp.eq.s32.totalorder %s19, 1
      %p58 = scmp.ne.s32.totalorder %s53, %s55
      %p59 = scmp.eq.s32.totalorder %s19, 0
      %p60 = por %p58, %p59
      %p61 = scmp.ne.s32.totalorder %s53, %s55
      %p62 = scmp.eq.s32.totalorder %s24, 1
      %p63 = por %p61, %p62
      %p64 = scmp.ne.s32.totalorder %s55, %s56
      %p65 = scmp.eq.s32.totalorder %s24, 0
      %p66 = por %p64, %p65
      %p67 = scmp.ne.s32.totalorder %s55, %s56
      %p68 = scmp.eq.s32.totalorder %s25, 1
      %p69 = por %p67, %p68
      %p71 = scmp.ne.s32.totalorder %s56, %s70
      %p72 = scmp.eq.s32.totalorder %s25, 0
      %p73 = por %p71, %p72
      %s75 = sadd.s32 %s74, 1
      %p78 = scmp.eq.s32.totalorder %s19, 1
      %p79 = scmp.ne.s32.totalorder %s74, %s76
      %p80 = scmp.eq.s32.totalorder %s19, 0
      %p81 = por %p79, %p80
      %p82 = scmp.ne.s32.totalorder %s74, %s76
      %p83 = scmp.eq.s32.totalorder %s24, 1
      %p84 = por %p82, %p83
      %p85 = scmp.ne.s32.totalorder %s76, %s77
      %p86 = scmp.eq.s32.totalorder %s24, 0
      %p87 = por %p85, %p86
      %p88 = scmp.ne.s32.totalorder %s76, %s77
      %p89 = scmp.eq.s32.totalorder %s25, 1
      %p90 = por %p88, %p89
      %p92 = scmp.ne.s32.totalorder %s77, %s91
      %p93 = scmp.eq.s32.totalorder %s25, 0
      %p94 = por %p92, %p93
      %s95 = ssub.s32 %s19, %s26
      %p96 = scmp.eq.s32.totalorder %s95, 0
      %s98 = sadd.s32 %s97, 1
      %s99 = scalar_select %p96, %s97, %s98
      %p102 = pneg %p96
      %p103 = scmp.eq.s32.totalorder %s19, 1
      %p104 = por %p102, %p103
      %p105 = scmp.ne.s32.totalorder %s97, %s100
      %p106 = scmp.eq.s32.totalorder %s19, 0
      %p107 = por %p105, %p106
      %p108 = scmp.ne.s32.totalorder %s97, %s100
      %p109 = scmp.eq.s32.totalorder %s24, 1
      %p110 = por %p108, %p109
      %p111 = scmp.ne.s32.totalorder %s100, %s101
      %p112 = scmp.eq.s32.totalorder %s24, 0
      %p113 = por %p111, %p112
      %p114 = scmp.ne.s32.totalorder %s100, %s101
      %p115 = scmp.eq.s32.totalorder %s25, 1
      %p116 = por %p114, %p115
      %p118 = scmp.ne.s32.totalorder %s101, %s117
      %p119 = scmp.eq.s32.totalorder %s25, 0
      %p120 = por %p118, %p119
      %s122 = sadd.s32 %s121, 1
      %p125 = scmp.eq.s32.totalorder %s19, 1
      %p126 = scmp.ne.s32.totalorder %s121, %s123
      %p127 = scmp.eq.s32.totalorder %s19, 0
      %p128 = por %p126, %p127
      %p129 = scmp.ne.s32.totalorder %s121, %s123
      %p130 = scmp.eq.s32.totalorder %s24, 1
      %p131 = por %p129, %p130
      %p132 = scmp.ne.s32.totalorder %s123, %s124
      %p133 = scmp.eq.s32.totalorder %s24, 0
      %p134 = por %p132, %p133
      %p135 = scmp.ne.s32.totalorder %s123, %s124
      %p136 = scmp.eq.s32.totalorder %s25, 1
      %p137 = por %p135, %p136
      %p139 = scmp.ne.s32.totalorder %s124, %s138
      %p140 = scmp.eq.s32.totalorder %s25, 0
      %p141 = por %p139, %p140
      %p142 = scmp.le.s32.totalorder 1, %s19
      %p143 = scmp.lt.s32.totalorder %s19, 3
      %p144 = pnand %p142, %p143
      %p145 = pneg %p144
      // Predicated region
      $region9: #{tpu_custom_call.1} parent=5 // pred_check
        _
      $region10: #{tpu_custom_call.1} parent=5 // pred_check_branch
        %147 = sbr.rel (%p144) target = $region12
      $region11: #{tpu_custom_call.1} parent=5 // pred_region
        %s148 = ssub.s32 %s19, 1
        // Predicated region
        $region13: #{tpu_custom_call.1} parent=11 // pred_check
          %p149 = pneg %p66
        $region14: #{tpu_custom_call.1} parent=11 // pred_check_branch
          %151 = sbr.rel (%p149) target = $region16
        $region15: #{tpu_custom_call.1} parent=11 // pred_region
          %s153 = ssub.s32 128, 128
          %154 = vsyncadd [#allocation6], %s153
          %s156 = sshll.u32 [#allocation5], 4
          %s157 = int_to_ptr.vmem [resolvable:$true] %s156
          %159 = dma.hbm_to_vmem [thread:$0]  %s1, 128, %s157, [#allocation6]
        $region16: #{tpu_custom_call.1} parent=11 // pred_fallthru
          _
        // Predicated region
        $region17: #{tpu_custom_call.1} parent=11 // pred_check
          %p160 = pneg %p87
        $region18: #{tpu_custom_call.1} parent=11 // pred_check_branch
          %162 = sbr.rel (%p160) target = $region20
        $region19: #{tpu_custom_call.1} parent=11 // pred_region
          %s164 = ssub.s32 2048, 2048
          %165 = vsyncadd [#allocation6], %s164
          %s166 = sshll.u32 [#allocation7], 4
          %s167 = int_to_ptr.vmem [resolvable:$true] %s166
          %172 = dma.hbm_to_vmem [thread:$0]  %s2, 2048, %s167, [#allocation6], 128, 128, 8
        $region20: #{tpu_custom_call.1} parent=11 // pred_fallthru
          _
      $region12: #{tpu_custom_call.1} parent=5 // pred_fallthru
        _
      %p173 = scmp.lt.s32.totalorder %s19, 2
      // Predicated region
      $region21: #{tpu_custom_call.1} parent=5 // pred_check
        %p174 = pneg %p173
      $region22: #{tpu_custom_call.1} parent=5 // pred_check_branch
        %176 = sbr.rel (%p174) target = $region24
      $region23: #{tpu_custom_call.1} parent=5 // pred_region
        // Predicated region
        $region25: #{tpu_custom_call.1} parent=23 // pred_check
          %p177 = pneg %p39
        $region26: #{tpu_custom_call.1} parent=23 // pred_check_branch
          %179 = sbr.rel (%p177) target = $region28
        $region27: #{tpu_custom_call.1} parent=23 // pred_region
          %s180 = sand.u32 %s29, 1
          %s181 = scalar_lea.sflag [#allocation3], %s180
          %s182 = sand.u32 %s29, 1
          %s183 = smul.addr %s182, 32
          %s184 = scalar_lea.vmem [#allocation2], %s183
          %s185 = smul.u32 4, %s19
          %s187 = ssub.s32 512, 512
          %188 = vsyncadd %s181, %s187
          %s189 = smul.addr %s185, 128
          %s190 = scalar_lea.hbm %s0, %s189
          %s191 = sshll.u32 %s184, 4
          %s192 = int_to_ptr.vmem [resolvable:$true] %s191
          %197 = dma.hbm_to_vmem [thread:$0]  %s190, 512, %s192, %s181, 128, 128, 8
        $region28: #{tpu_custom_call.1} parent=23 // pred_fallthru
          _
      $region24: #{tpu_custom_call.1} parent=5 // pred_fallthru
        _
      %p198 = scmp.le.s32.totalorder 1, %s19
      %p199 = scmp.lt.s32.totalorder %s19, 3
      %p200 = pnand %p198, %p199
      %p201 = pneg %p200
      // Predicated region
      $region29: #{tpu_custom_call.1} parent=5 // pred_check
        _
      $region30: #{tpu_custom_call.1} parent=5 // pred_check_branch
        %203 = sbr.rel (%p200) target = $region32
      $region31: #{tpu_custom_call.1} parent=5 // pred_region
        %s204 = ssub.s32 %s19, 1
        %s205 = sand.u32 %s32, 1
        %s206 = scalar_lea.sflag [#allocation3], %s205
        %s207 = sand.u32 %s32, 1
        %s208 = smul.addr %s207, 32
        %s209 = scalar_lea.vmem [#allocation2], %s208
        // Predicated region
        $region33: #{tpu_custom_call.1} parent=31 // pred_check
          %p210 = pneg %p45
        $region34: #{tpu_custom_call.1} parent=31 // pred_check_branch
          %212 = sbr.rel (%p210) target = $region36
        $region35: #{tpu_custom_call.1} parent=31 // pred_region
          %213 = dma.done %s206, 512
        $region36: #{tpu_custom_call.1} parent=31 // pred_fallthru
          _
        // Predicated region
        $region37: #{tpu_custom_call.1} parent=31 // pred_check
          %p214 = pneg %p66
        $region38: #{tpu_custom_call.1} parent=31 // pred_check_branch
          %216 = sbr.rel (%p214) target = $region40
        $region39: #{tpu_custom_call.1} parent=31 // pred_region
          %217 = dma.done [#allocation6], 128
        $region40: #{tpu_custom_call.1} parent=31 // pred_fallthru
          _
        // Predicated region
        $region41: #{tpu_custom_call.1} parent=31 // pred_check
          %p218 = pneg %p87
        $region42: #{tpu_custom_call.1} parent=31 // pred_check_branch
          %220 = sbr.rel (%p218) target = $region44
        $region43: #{tpu_custom_call.1} parent=31 // pred_region
          %221 = dma.done [#allocation6], 2048
        $region44: #{tpu_custom_call.1} parent=31 // pred_fallthru
          _
        %s222 = sand.u32 %s32, 1
        %s223 = scalar_lea.sflag [#allocation3], %s222
        %s224 = sand.u32 %s32, 1
        %s225 = smul.addr %s224, 32
        %s226 = scalar_lea.vmem [#allocation2], %s225
        %p227 = pneg %p45
        %p228 = pneg %p42
        %p229 = pneg %p66
        %p230 = pneg %p63
        %p231 = pneg %p87
        %p232 = pneg %p84
        %p233 = pneg %p113
        %p234 = pneg %p110
        %s235 = sand.u32 %s100, 1
        %s236 = scalar_lea.sflag [#allocation4], %s235
        %s237 = sand.u32 %s100, 1
        %s238 = smul.addr %s237, 32
        %s239 = scalar_lea.vmem [#allocation8], %s238
        %p240 = pneg %p134
        %p241 = pneg %p131
        %s242 = smul.u32 4, %s24
        %s243 = smul.u32 4, %s24
        %p244 = scmp.eq.s32.totalorder %s24, 0
        // Predicated region
        $region45: #{tpu_custom_call.1} parent=31 // pred_check
          %p245 = pneg %p244
        $region46: #{tpu_custom_call.1} parent=31 // pred_check_branch
          %247 = sbr.rel (%p245) target = $region48
        $region47: #{tpu_custom_call.1} parent=31 // pred_region
          %v248 = vld [vmem:[#allocation5] sm:$0xff]
          %249 = vst [vmem:[#allocation9] sm:$0xff] %v248
        $region48: #{tpu_custom_call.1} parent=31 // pred_fallthru
          _
        %v250 = vld [vmem:[#allocation7] sm:$0xff]
        %v251 = vld [vmem:[#allocation7 + $0x8] sm:$0xff]
        %v252 = vld [vmem:[#allocation7 + $0x10] sm:$0xff]
        %v253 = vld [vmem:[#allocation7 + $0x18] sm:$0xff]
        %v254 = vld [vmem:[#allocation7 + $0x20] sm:$0xff]
        %v255 = vld [vmem:[#allocation7 + $0x28] sm:$0xff]
        %v256 = vld [vmem:[#allocation7 + $0x30] sm:$0xff]
        %v257 = vld [vmem:[#allocation7 + $0x38] sm:$0xff]
        %v258 = vld [vmem:[#allocation7 + $0x40] sm:$0xff]
        %v259 = vld [vmem:[#allocation7 + $0x48] sm:$0xff]
        %v260 = vld [vmem:[#allocation7 + $0x50] sm:$0xff]
        %v261 = vld [vmem:[#allocation7 + $0x58] sm:$0xff]
        %v262 = vld [vmem:[#allocation7 + $0x60] sm:$0xff]
        %v263 = vld [vmem:[#allocation7 + $0x68] sm:$0xff]
        %v264 = vld [vmem:[#allocation7 + $0x70] sm:$0xff]
        %v265 = vld [vmem:[#allocation7 + $0x78] sm:$0xff]
        %v266 = vld [vmem:[#allocation9] sm:$0xff]
        %v267 = vld [vmem:[%s209] sm:$0xff]
        %268 = vmatprep.subr.mxu0 0.0
        %269 = vmatpush1.msra.mxu0 %v250
        %270 = vmatprep.subr.mxu0 0.0
        %271 = vmatpush1.msra.mxu0 %v251
        %272 = vmatprep.subr.mxu0 0.0
        %273 = vmatpush1.msra.mxu0 %v252
        %274 = vmatprep.subr.mxu0 0.0
        %275 = vmatpush1.msra.mxu0 %v253
        %276 = vmatprep.subr.mxu0 0.0
        %277 = vmatpush1.msra.mxu0 %v254
        %278 = vmatprep.subr.mxu0 0.0
        %279 = vmatpush1.msra.mxu0 %v255
        %280 = vmatprep.subr.mxu0 0.0
        %281 = vmatpush1.msra.mxu0 %v256
        %282 = vmatprep.subr.mxu0 0.0
        %283 = vmatpush1.msra.mxu0 %v257
        %284 = vmatprep.subr.mxu0 0.0
        %285 = vmatpush1.msra.mxu0 %v258
        %286 = vmatprep.subr.mxu0 0.0
        %287 = vmatpush1.msra.mxu0 %v259
        %288 = vmatprep.subr.mxu0 0.0
        %289 = vmatpush1.msra.mxu0 %v260
        %290 = vmatprep.subr.mxu0 0.0
        %291 = vmatpush1.msra.mxu0 %v261
        %292 = vmatprep.subr.mxu0 0.0
        %293 = vmatpush1.msra.mxu0 %v262
        %294 = vmatprep.subr.mxu0 0.0
        %295 = vmatpush1.msra.mxu0 %v263
        %296 = vmatprep.subr.mxu0 0.0
        %297 = vmatpush1.msra.mxu0 %v264
        %298 = vmatprep.subr.mxu0 0.0
        %299 = vmatpush1.msra.mxu0 %v265
        %300 = vmatprep.subr.mxu0 0.0
        %301 = vmatpush1.msra.mxu0 0.0
        %302 = vmatprep.subr.mxu0 0.0
        %303 = vmatpush1.msra.mxu0 0.0
        %304 = vmatprep.subr.mxu0 0.0
        %305 = vmatpush1.msra.mxu0 0.0
        %306 = vmatprep.subr.mxu0 0.0
        %307 = vmatpush1.msra.mxu0 0.0
        %308 = vmatprep.subr.mxu0 0.0
        %309 = vmatpush1.msra.mxu0 0.0
        %310 = vmatprep.subr.mxu0 0.0
        %311 = vmatpush1.msra.mxu0 0.0
        %312 = vmatprep.subr.mxu0 0.0
        %313 = vmatpush1.msra.mxu0 0.0
        %314 = vmatprep.subr.mxu0 0.0
        %315 = vmatpush1.msra.mxu0 0.0
        %316 = vmatprep.subr.mxu0 0.0
        %317 = vmatpush1.msra.mxu0 0.0
        %318 = vmatprep.subr.mxu0 0.0
        %319 = vmatpush1.msra.mxu0 0.0
        %320 = vmatprep.subr.mxu0 0.0
        %321 = vmatpush1.msra.mxu0 0.0
        %322 = vmatprep.subr.mxu0 0.0
        %323 = vmatpush1.msra.mxu0 0.0
        %324 = vmatprep.subr.mxu0 0.0
        %325 = vmatpush1.msra.mxu0 0.0
        %326 = vmatprep.subr.mxu0 0.0
        %327 = vmatpush1.msra.mxu0 0.0
        %328 = vmatprep.subr.mxu0 0.0
        %329 = vmatpush1.msra.mxu0 0.0
        %330 = vmatprep.subr.mxu0 0.0
        %331 = vmatpush1.msra.mxu0 0.0
        %332 = vmatprep.mubr.f32.mxu0 0.0
        %333 = vmatmul.mubr.f32.gmra.mrb[0].mxu0 %v266
        %v334 = vpop.f32.mrb[0].mxu0
        %v335 = vadd.f32 0.0, %v334
        %v336 = vpop.f32.mrb[0].mxu0
        %337 = vdwg.mxu0
        %v338 = vadd.f32 %v267, %v335
        %v339 = vtanh.pop %v338
        %340 = vst [vmem:[%s239] sm:$0xff] %v339
        %s341 = scalar_lea.vmem %s209, 8 [#allocation2]
        %v342 = vld [vmem:[%s341] sm:$0xff]
        %343 = vmatprep.subr.mxu0 0.0
        %344 = vmatpush1.msra.mxu0 %v250
        %345 = vmatprep.subr.mxu0 0.0
        %346 = vmatpush1.msra.mxu0 %v251
        %347 = vmatprep.subr.mxu0 0.0
        %348 = vmatpush1.msra.mxu0 %v252
        %349 = vmatprep.subr.mxu0 0.0
        %350 = vmatpush1.msra.mxu0 %v253
        %351 = vmatprep.subr.mxu0 0.0
        %352 = vmatpush1.msra.mxu0 %v254
        %353 = vmatprep.subr.mxu0 0.0
        %354 = vmatpush1.msra.mxu0 %v255
        %355 = vmatprep.subr.mxu0 0.0
        %356 = vmatpush1.msra.mxu0 %v256
        %357 = vmatprep.subr.mxu0 0.0
        %358 = vmatpush1.msra.mxu0 %v257
        %359 = vmatprep.subr.mxu0 0.0
        %360 = vmatpush1.msra.mxu0 %v258
        %361 = vmatprep.subr.mxu0 0.0
        %362 = vmatpush1.msra.mxu0 %v259
        %363 = vmatprep.subr.mxu0 0.0
        %364 = vmatpush1.msra.mxu0 %v260
        %365 = vmatprep.subr.mxu0 0.0
        %366 = vmatpush1.msra.mxu0 %v261
        %367 = vmatprep.subr.mxu0 0.0
        %368 = vmatpush1.msra.mxu0 %v262
        %369 = vmatprep.subr.mxu0 0.0
        %370 = vmatpush1.msra.mxu0 %v263
        %371 = vmatprep.subr.mxu0 0.0
        %372 = vmatpush1.msra.mxu0 %v264
        %373 = vmatprep.subr.mxu0 0.0
        %374 = vmatpush1.msra.mxu0 %v265
        %375 = vmatprep.subr.mxu0 0.0
        %376 = vmatpush1.msra.mxu0 0.0
        %377 = vmatprep.subr.mxu0 0.0
        %378 = vmatpush1.msra.mxu0 0.0
        %379 = vmatprep.subr.mxu0 0.0
        %380 = vmatpush1.msra.mxu0 0.0
        %381 = vmatprep.subr.mxu0 0.0
        %382 = vmatpush1.msra.mxu0 0.0
        %383 = vmatprep.subr.mxu0 0.0
        %384 = vmatpush1.msra.mxu0 0.0
        %385 = vmatprep.subr.mxu0 0.0
        %386 = vmatpush1.msra.mxu0 0.0
        %387 = vmatprep.subr.mxu0 0.0
        %388 = vmatpush1.msra.mxu0 0.0
        %389 = vmatprep.subr.mxu0 0.0
        %390 = vmatpush1.msra.mxu0 0.0
        %391 = vmatprep.subr.mxu0 0.0
        %392 = vmatpush1.msra.mxu0 0.0
        %393 = vmatprep.subr.mxu0 0.0
        %394 = vmatpush1.msra.mxu0 0.0
        %395 = vmatprep.subr.mxu0 0.0
        %396 = vmatpush1.msra.mxu0 0.0
        %397 = vmatprep.subr.mxu0 0.0
        %398 = vmatpush1.msra.mxu0 0.0
        %399 = vmatprep.subr.mxu0 0.0
        %400 = vmatpush1.msra.mxu0 0.0
        %401 = vmatprep.subr.mxu0 0.0
        %402 = vmatpush1.msra.mxu0 0.0
        %403 = vmatprep.subr.mxu0 0.0
        %404 = vmatpush1.msra.mxu0 0.0
        %405 = vmatprep.subr.mxu0 0.0
        %406 = vmatpush1.msra.mxu0 0.0
        %407 = vmatprep.mubr.f32.mxu0 0.0
        %408 = vmatmul.mubr.f32.gmra.mrb[0].mxu0 %v339
        %v409 = vpop.f32.mrb[0].mxu0
        %v410 = vadd.f32 0.0, %v409
        %v411 = vpop.f32.mrb[0].mxu0
        %412 = vdwg.mxu0
        %v413 = vadd.f32 %v342, %v410
        %v414 = vtanh.pop %v413
        %s415 = scalar_lea.vmem %s239, 8 [#allocation8]
        %416 = vst [vmem:[%s415] sm:$0xff] %v414
        %s417 = scalar_lea.vmem %s209, 16 [#allocation2]
        %v418 = vld [vmem:[%s417] sm:$0xff]
        %419 = vmatprep.subr.mxu0 0.0
        %420 = vmatpush1.msra.mxu0 %v250
        %421 = vmatprep.subr.mxu0 0.0
        %422 = vmatpush1.msra.mxu0 %v251
        %423 = vmatprep.subr.mxu0 0.0
        %424 = vmatpush1.msra.mxu0 %v252
        %425 = vmatprep.subr.mxu0 0.0
        %426 = vmatpush1.msra.mxu0 %v253
        %427 = vmatprep.subr.mxu0 0.0
        %428 = vmatpush1.msra.mxu0 %v254
        %429 = vmatprep.subr.mxu0 0.0
        %430 = vmatpush1.msra.mxu0 %v255
        %431 = vmatprep.subr.mxu0 0.0
        %432 = vmatpush1.msra.mxu0 %v256
        %433 = vmatprep.subr.mxu0 0.0
        %434 = vmatpush1.msra.mxu0 %v257
        %435 = vmatprep.subr.mxu0 0.0
        %436 = vmatpush1.msra.mxu0 %v258
        %437 = vmatprep.subr.mxu0 0.0
        %438 = vmatpush1.msra.mxu0 %v259
        %439 = vmatprep.subr.mxu0 0.0
        %440 = vmatpush1.msra.mxu0 %v260
        %441 = vmatprep.subr.mxu0 0.0
        %442 = vmatpush1.msra.mxu0 %v261
        %443 = vmatprep.subr.mxu0 0.0
        %444 = vmatpush1.msra.mxu0 %v262
        %445 = vmatprep.subr.mxu0 0.0
        %446 = vmatpush1.msra.mxu0 %v263
        %447 = vmatprep.subr.mxu0 0.0
        %448 = vmatpush1.msra.mxu0 %v264
        %449 = vmatprep.subr.mxu0 0.0
        %450 = vmatpush1.msra.mxu0 %v265
        %451 = vmatprep.subr.mxu0 0.0
        %452 = vmatpush1.msra.mxu0 0.0
        %453 = vmatprep.subr.mxu0 0.0
        %454 = vmatpush1.msra.mxu0 0.0
        %455 = vmatprep.subr.mxu0 0.0
        %456 = vmatpush1.msra.mxu0 0.0
        %457 = vmatprep.subr.mxu0 0.0
        %458 = vmatpush1.msra.mxu0 0.0
        %459 = vmatprep.subr.mxu0 0.0
        %460 = vmatpush1.msra.mxu0 0.0
        %461 = vmatprep.subr.mxu0 0.0
        %462 = vmatpush1.msra.mxu0 0.0
        %463 = vmatprep.subr.mxu0 0.0
        %464 = vmatpush1.msra.mxu0 0.0
        %465 = vmatprep.subr.mxu0 0.0
        %466 = vmatpush1.msra.mxu0 0.0
        %467 = vmatprep.subr.mxu0 0.0
        %468 = vmatpush1.msra.mxu0 0.0
        %469 = vmatprep.subr.mxu0 0.0
        %470 = vmatpush1.msra.mxu0 0.0
        %471 = vmatprep.subr.mxu0 0.0
        %472 = vmatpush1.msra.mxu0 0.0
        %473 = vmatprep.subr.mxu0 0.0
        %474 = vmatpush1.msra.mxu0 0.0
        %475 = vmatprep.subr.mxu0 0.0
        %476 = vmatpush1.msra.mxu0 0.0
        %477 = vmatprep.subr.mxu0 0.0
        %478 = vmatpush1.msra.mxu0 0.0
        %479 = vmatprep.subr.mxu0 0.0
        %480 = vmatpush1.msra.mxu0 0.0
        %481 = vmatprep.subr.mxu0 0.0
        %482 = vmatpush1.msra.mxu0 0.0
        %483 = vmatprep.mubr.f32.mxu0 0.0
        %484 = vmatmul.mubr.f32.gmra.mrb[0].mxu0 %v414
        %v485 = vpop.f32.mrb[0].mxu0
        %v486 = vadd.f32 0.0, %v485
        %v487 = vpop.f32.mrb[0].mxu0
        %488 = vdwg.mxu0
        %v489 = vadd.f32 %v418, %v486
        %v490 = vtanh.pop %v489
        %s491 = scalar_lea.vmem %s239, 16 [#allocation8]
        %492 = vst [vmem:[%s491] sm:$0xff] %v490
        %s493 = scalar_lea.vmem %s209, 24 [#allocation2]
        %v494 = vld [vmem:[%s493] sm:$0xff]
        %495 = vmatprep.subr.mxu0 0.0
        %496 = vmatpush1.msra.mxu0 %v250
        %497 = vmatprep.subr.mxu0 0.0
        %498 = vmatpush1.msra.mxu0 %v251
        %499 = vmatprep.subr.mxu0 0.0
        %500 = vmatpush1.msra.mxu0 %v252
        %501 = vmatprep.subr.mxu0 0.0
        %502 = vmatpush1.msra.mxu0 %v253
        %503 = vmatprep.subr.mxu0 0.0
        %504 = vmatpush1.msra.mxu0 %v254
        %505 = vmatprep.subr.mxu0 0.0
        %506 = vmatpush1.msra.mxu0 %v255
        %507 = vmatprep.subr.mxu0 0.0
        %508 = vmatpush1.msra.mxu0 %v256
        %509 = vmatprep.subr.mxu0 0.0
        %510 = vmatpush1.msra.mxu0 %v257
        %511 = vmatprep.subr.mxu0 0.0
        %512 = vmatpush1.msra.mxu0 %v258
        %513 = vmatprep.subr.mxu0 0.0
        %514 = vmatpush1.msra.mxu0 %v259
        %515 = vmatprep.subr.mxu0 0.0
        %516 = vmatpush1.msra.mxu0 %v260
        %517 = vmatprep.subr.mxu0 0.0
        %518 = vmatpush1.msra.mxu0 %v261
        %519 = vmatprep.subr.mxu0 0.0
        %520 = vmatpush1.msra.mxu0 %v262
        %521 = vmatprep.subr.mxu0 0.0
        %522 = vmatpush1.msra.mxu0 %v263
        %523 = vmatprep.subr.mxu0 0.0
        %524 = vmatpush1.msra.mxu0 %v264
        %525 = vmatprep.subr.mxu0 0.0
        %526 = vmatpush1.msra.mxu0 %v265
        %527 = vmatprep.subr.mxu0 0.0
        %528 = vmatpush1.msra.mxu0 0.0
        %529 = vmatprep.subr.mxu0 0.0
        %530 = vmatpush1.msra.mxu0 0.0
        %531 = vmatprep.subr.mxu0 0.0
        %532 = vmatpush1.msra.mxu0 0.0
        %533 = vmatprep.subr.mxu0 0.0
        %534 = vmatpush1.msra.mxu0 0.0
        %535 = vmatprep.subr.mxu0 0.0
        %536 = vmatpush1.msra.mxu0 0.0
        %537 = vmatprep.subr.mxu0 0.0
        %538 = vmatpush1.msra.mxu0 0.0
        %539 = vmatprep.subr.mxu0 0.0
        %540 = vmatpush1.msra.mxu0 0.0
        %541 = vmatprep.subr.mxu0 0.0
        %542 = vmatpush1.msra.mxu0 0.0
        %543 = vmatprep.subr.mxu0 0.0
        %544 = vmatpush1.msra.mxu0 0.0
        %545 = vmatprep.subr.mxu0 0.0
        %546 = vmatpush1.msra.mxu0 0.0
        %547 = vmatprep.subr.mxu0 0.0
        %548 = vmatpush1.msra.mxu0 0.0
        %549 = vmatprep.subr.mxu0 0.0
        %550 = vmatpush1.msra.mxu0 0.0
        %551 = vmatprep.subr.mxu0 0.0
        %552 = vmatpush1.msra.mxu0 0.0
        %553 = vmatprep.subr.mxu0 0.0
        %554 = vmatpush1.msra.mxu0 0.0
        %555 = vmatprep.subr.mxu0 0.0
        %556 = vmatpush1.msra.mxu0 0.0
        %557 = vmatprep.subr.mxu0 0.0
        %558 = vmatpush1.msra.mxu0 0.0
        %559 = vmatprep.mubr.f32.mxu0 0.0
        %560 = vmatmul.mubr.f32.gmra.mrb[0].mxu0 %v490
        %v561 = vpop.f32.mrb[0].mxu0
        %v562 = vadd.f32 0.0, %v561
        %v563 = vpop.f32.mrb[0].mxu0
        %564 = vdwg.mxu0
        %v565 = vadd.f32 %v494, %v562
        %v566 = vtanh.pop %v565
        %s567 = scalar_lea.vmem %s239, 24 [#allocation8]
        %568 = vst [vmem:[%s567] sm:$0xff] %v566
        %569 = vst [vmem:[#allocation9] sm:$0xff] %v566
        %s570 = sand.u32 %s100, 1
        %s571 = scalar_lea.sflag [#allocation4], %s570
        %s572 = sand.u32 %s100, 1
        %s573 = smul.addr %s572, 32
        %s574 = scalar_lea.vmem [#allocation8], %s573
        // Predicated region
        $region49: #{tpu_custom_call.1} parent=31 // pred_check
          %p575 = pneg %p110
        $region50: #{tpu_custom_call.1} parent=31 // pred_check_branch
          %577 = sbr.rel (%p575) target = $region52
        $region51: #{tpu_custom_call.1} parent=31 // pred_region
          %s578 = smul.u32 4, %s24
          %s580 = ssub.s32 512, 512
          %581 = vsyncadd %s571, %s580
          %s582 = smul.addr %s578, 128
          %s583 = scalar_lea.hbm %s3, %s582
          %s584 = sshll.u32 %s574, 4
          %s585 = int_to_ptr.vmem [resolvable:$true] %s584
          %590 = dma.vmem_to_hbm [thread:$0]  %s585, 512, %s583, %s571, 128, 128, 8
        $region52: #{tpu_custom_call.1} parent=31 // pred_fallthru
          _
        // Predicated region
        $region53: #{tpu_custom_call.1} parent=31 // pred_check
          %p591 = pneg %p131
        $region54: #{tpu_custom_call.1} parent=31 // pred_check_branch
          %593 = sbr.rel (%p591) target = $region56
        $region55: #{tpu_custom_call.1} parent=31 // pred_region
          %s595 = ssub.s32 128, 128
          %596 = vsyncadd [#allocation10], %s595
          %s598 = sshll.u32 [#allocation9], 4
          %s599 = int_to_ptr.vmem [resolvable:$true] %s598
          %601 = dma.vmem_to_hbm [thread:$0]  %s599, 128, %s4, [#allocation10]
        $region56: #{tpu_custom_call.1} parent=31 // pred_fallthru
          _
        // Predicated region
        $region57: #{tpu_custom_call.1} parent=31 // pred_check
          %p602 = pneg %p131
        $region58: #{tpu_custom_call.1} parent=31 // pred_check_branch
          %604 = sbr.rel (%p602) target = $region60
        $region59: #{tpu_custom_call.1} parent=31 // pred_region
          %605 = dma.done [#allocation10], 128
        $region60: #{tpu_custom_call.1} parent=31 // pred_fallthru
          _
      $region32: #{tpu_custom_call.1} parent=5 // pred_fallthru
        _
      %p606 = scmp.le.s32.totalorder 2, %s19
      // Predicated region
      $region61: #{tpu_custom_call.1} parent=5 // pred_check
        %p607 = pneg %p606
      $region62: #{tpu_custom_call.1} parent=5 // pred_check_branch
        %609 = sbr.rel (%p607) target = $region64
      $region63: #{tpu_custom_call.1} parent=5 // pred_region
        %s610 = ssub.s32 %s19, 2
        // Predicated region
        $region65: #{tpu_custom_call.1} parent=63 // pred_check
          %p611 = pneg %p116
        $region66: #{tpu_custom_call.1} parent=63 // pred_check_branch
          %613 = sbr.rel (%p611) target = $region68
        $region67: #{tpu_custom_call.1} parent=63 // pred_region
          %s614 = sand.u32 %s101, 1
          %s615 = scalar_lea.sflag [#allocation4], %s614
          %s616 = sand.u32 %s101, 1
          %s617 = smul.addr %s616, 32
          %s618 = scalar_lea.vmem [#allocation8], %s617
          %619 = dma.done %s615, 512
        $region68: #{tpu_custom_call.1} parent=63 // pred_fallthru
          _
      $region64: #{tpu_custom_call.1} parent=5 // pred_fallthru
        _
    $region6: #{tpu_custom_call.1} parent=1 // loop_footer
      %s23 = sadd.s32 1, %s19
    $region7: #{tpu_custom_call.1} parent=1 // loop_footer_branch
      %18 = sbr.rel target = $region3
    $region8: #{tpu_custom_call.1} parent=1 // loop_exit
      _
    %620 = vsyncpa [#allocation3], 1
    %s621 = scalar_lea.sflag [#allocation3], 1
    %622 = vsyncpa %s621, 1
    %623 = vsyncpa [#allocation6], 1
    %624 = vsyncpa [#allocation4], 1
    %s625 = scalar_lea.sflag [#allocation4], 1
    %626 = vsyncpa %s625, 1
    %627 = vsyncpa [#allocation10], 1

</llo_original>
